<compile_context>
chip_gen: v6e
topology: v6e:2x2x1
jax: 0.10.0
libtpu: 0.0.40
codegen_flags: <defaults>
</compile_context>

<pallas_src>
import numpy as np
import jax
import jax.numpy as jnp
from jax.experimental import pallas as pl
from jax.experimental.pallas import tpu as pltpu


def _round_up(x, m):
    return ((x + m - 1) // m) * m


# --------------------------------------------------------------------------- fused kernel

def _make_kernel(cin, oc, tile_hw, T):
    """Builds the fused TemporalInceptionModule kernel body (closure over static sizes)."""
    c0, c1, c2, c3, c4, c5 = oc
    ctot = c0 + c2 + c4 + c5
    c1tot = sum(oc)
    n = T * tile_hw

    # row offsets of the six level-1 convs inside the merged level-1 matmul output
    s = [0]
    for c in oc[:-1]:
        s.append(s[-1] + c)
    s0, s1, s2, s3, s4, s5 = s
    # output-channel offsets of the four branches (= conv_x row offsets)
    o0, o2, o4, o5 = 0, c0, c0 + c2, c0 + c2 + c4

    def kernel(x_ref, w1_ref, w2_ref, o_ref):
        x = x_ref[0]                                     # (Cin, T*tile_hw) bf16, lane-dense
        ones_row = jnp.ones((1, n), jnp.bfloat16)        # bias row for the folded-bias matmuls

        def neighbors(a):
            # temporal shift by one frame in the lane-flat (C, T*tile_hw) layout; zero fill
            # reproduces the reference "same" zero padding exactly.
            z = jnp.zeros((a.shape[0], tile_hw), a.dtype)
            prev = jnp.concatenate([z, a[:, : n - tile_hw]], axis=1)   # plane t sees t-1
            nxt = jnp.concatenate([a[:, tile_hw:], z], axis=1)         # plane t sees t+1
            return prev, a, nxt

        def maxpool3_t(a):
            # temporal max-pool k=3, stride 1, zero "same" padding (exact: PyTorch F.pads
            # zeros and the pooled values are sums of ReLU outputs, i.e. >= 0).
            m = jnp.maximum(a[:, : n - tile_hw], a[:, tile_hw:])
            return jnp.maximum(
                jnp.concatenate([a[:, :tile_hw], m], axis=1),
                jnp.concatenate([m, a[:, n - tile_hw:]], axis=1))

        relu = lambda v: jnp.maximum(v, 0.0)

        # ---- level 1: six k=3 convs + 1x1x1 conv_x + all biases in ONE MXU matmul ----
        rhs1 = jnp.concatenate([*neighbors(x), ones_row], axis=0)       # (3*Cin+1, n) bf16
        h1 = jnp.dot(w1_ref[...], rhs1, preferred_element_type=jnp.float32)
        cx = h1[c1tot:c1tot + ctot]                                     # conv_x: bias only, no ReLU

        out0 = relu(h1[s0:s0 + c0])                                     # conv1
        h2a = relu(h1[s1:s1 + c1]).astype(jnp.bfloat16)                 # conv2a_1_2
        h2p = relu(h1[s2:s2 + c2])                                      # conv2a__2
        h4a = relu(h1[s3:s3 + c3]).astype(jnp.bfloat16)                 # conv4a_3_4
        h4b = relu(h1[s4:s4 + c4]).astype(jnp.bfloat16)                 # conv4a_4_4
        out5 = relu(h1[s5:s5 + c5])                                     # conv6

        # ---- level 2: three k=3 convs merged block-diagonally into ONE matmul ----
        rhs2 = jnp.concatenate(
            [*neighbors(h2a), *neighbors(h4a), *neighbors(h4b), ones_row], axis=0)
        h2 = relu(jnp.dot(w2_ref[...], rhs2, preferred_element_type=jnp.float32))
        out2 = maxpool3_t(h2[0:c2] + h2p)
        out4 = maxpool3_t(h2[c2:c2 + c4] + h2[c2 + c4:c2 + 2 * c4])

        # ---- branch + conv_x residual written straight into o_ref row slices ----
        dt = o_ref.dtype
        o_ref[0, o0:o0 + c0, :] = (out0 + cx[o0:o0 + c0]).astype(dt)
        o_ref[0, o2:o2 + c2, :] = (out2 + cx[o2:o2 + c2]).astype(dt)
        o_ref[0, o4:o4 + c4, :] = (out4 + cx[o4:o4 + c4]).astype(dt)
        o_ref[0, o5:o5 + c5, :] = (out5 + cx[o5:o5 + c5]).astype(dt)

    return kernel


# --------------------------------------------------------------------------- sizing helpers

def _vmem_capacity_bytes():
    # Generation-aware (v5e/v6e: 128 MiB, v7x: 64 MiB per TensorCore); conservative fallback.
    try:
        return int(pltpu.get_tpu_info().vmem_capacity_bytes)
    except Exception:
        return 64 * 1024 * 1024


def _choose_tile_hw(cin, oc, T, HW, B, out_bytes, vmem_cap):
    c0, c1, c2, c3, c4, c5 = oc
    ctot = c0 + c2 + c4 + c5
    c1tot = sum(oc)
    # bytes per lane-column of the flattened (t, hw) axis: double-buffered I/O blocks plus
    # the major in-kernel temporaries, with a margin for spills / relayout buffers.
    per_col = (2 * cin * 2                              # x block (bf16, double buffered)
               + 2 * ctot * out_bytes                   # out block (double buffered)
               + (3 * cin + 1) * 2                      # level-1 im2col (bf16)
               + (c1tot + ctot) * 4                     # h1 (f32)
               + (c1 + c3 + c4) * 2                     # bf16 casts of level-2 inputs
               + (3 * (c1 + c3 + c4) + 1) * 2           # level-2 im2col (bf16)
               + (c2 + 2 * c4) * 4                      # h2 (f32)
               + (c0 + c5 + c2 + 2 * c4 + ctot) * 4     # branch slices / pre-pool sums / cx
               + 6 * max(cin, c1, c3, c4, c2 + 2 * c4) * 4)  # shift/pool temporaries
    per_col = int(per_col * 1.5)
    budget = vmem_cap // 4
    tile_hw = max(((budget // per_col) // T) // 128 * 128, 128)
    tile_hw = min(tile_hw, _round_up(HW, 128))
    # keep at least a few grid steps so both v7x TensorCores stay busy and the pipeline
    # can hide the prologue DMA.
    min_steps = 4
    while tile_hw > 128 and B * pl.cdiv(HW, tile_hw) < min_steps:
        tile_hw -= 128
    return tile_hw, per_col


# --------------------------------------------------------------------------- wrapper

def temporal_inception_forward(x_ncthw, w1_packed, w2_packed, oc, *, out_dtype=jnp.float32):
    """Fused forward.  x: (B, Cin, T, H, W) f32 -> (B, Ctot, T, H, W) out_dtype."""
    B, cin, T, H, W = x_ncthw.shape
    c0, c1, c2, c3, c4, c5 = oc
    ctot = c0 + c2 + c4 + c5
    HW = H * W
    out_bytes = jnp.dtype(out_dtype).itemsize

    vmem_cap = _vmem_capacity_bytes()
    tile_hw, per_col = _choose_tile_hw(cin, oc, T, HW, B, out_bytes, vmem_cap)
    HWp = _round_up(HW, tile_hw)
    n_tiles = HWp // tile_hw
    n = T * tile_hw
    G = B * n_tiles

    # ---- host pre-tiling: each grid block is already lane-flat (Cin, T*tile_hw), bf16 ----
    x_r = x_ncthw.reshape(B, cin, T, HW)
    if HWp != HW:
        x_r = jnp.pad(x_r, ((0, 0), (0, 0), (0, 0), (0, HWp - HW)))
    x_r = x_r.reshape(B, cin, T, n_tiles, tile_hw)
    x_r = jnp.transpose(x_r, (0, 3, 1, 2, 4)).reshape(G, cin, n).astype(jnp.bfloat16)

    kernel = _make_kernel(cin, oc, tile_hw, T)

    w_bytes = (w1_packed.size + w2_packed.size) * 2
    est = per_col * n + 4 * w_bytes + (1 << 20)
    vmem_limit = int(min(vmem_cap * 3 // 4, max(2 * est, 32 * 1024 * 1024)))

    # TODO(synk): constant weight blocks could use pipeline_mode=pl.Buffered(1) to save a
    # little VMEM headroom on v7x; kept default-buffered here for maximum compatibility.
    out = pl.pallas_call(
        kernel,
        out_shape=jax.ShapeDtypeStruct((G, ctot, n), out_dtype),
        grid=(G,),
        in_specs=[
            pl.BlockSpec((1, cin, n), lambda i: (i, 0, 0)),
            pl.BlockSpec(w1_packed.shape, lambda i: (0, 0)),
            pl.BlockSpec(w2_packed.shape, lambda i: (0, 0)),
        ],
        out_specs=pl.BlockSpec((1, ctot, n), lambda i: (i, 0, 0)),
        compiler_params=pltpu.CompilerParams(
            dimension_semantics=("parallel",),
            vmem_limit_bytes=vmem_limit),
    )(x_r, w1_packed, w2_packed)

    out = out.reshape(B, n_tiles, ctot, T, tile_hw)
    out = jnp.transpose(out, (0, 2, 3, 1, 4)).reshape(B, ctot, T, HWp)
    return out[..., :HW].reshape(B, ctot, T, H, W)


# --------------------------------------------------------------------------- parameters

def _fold_unit(w, gamma, beta, mean, var, eps=1e-3):
    """Unit3D = Conv3d(k=(3,1,1), bias=False) + BatchNorm3d(eps=1e-3) folded (inference).

    w: (Co, Cin, 3) -> ((Co, 3*Cin) f32 with BN scale folded, col k = dt*Cin + cin; bias (Co,))."""
    co, ci, _ = w.shape
    scale = gamma / jnp.sqrt(var + eps)
    bias = beta - mean * scale
    w_r = jnp.transpose(w, (2, 1, 0)).reshape(3 * ci, co).T
    return w_r * scale[:, None], bias


def make_params(key, cin, oc):
    """Random module parameters with PyTorch-equivalent shapes (BN folded, inference mode)."""
    defs = {"conv1": (cin, oc[0]), "conv2a_1_2": (cin, oc[1]), "conv2b_1_2": (oc[1], oc[2]),
            "conv2a__2": (cin, oc[2]), "conv4a_3_4": (cin, oc[3]), "conv4b_3_4": (oc[3], oc[4]),
            "conv4a_4_4": (cin, oc[4]), "conv4b_4_4": (oc[4], oc[4]), "conv6": (cin, oc[5])}
    keys = jax.random.split(key, len(defs) + 2)
    units = {}
    for (name, (ci, co)), k in zip(defs.items(), keys[:len(defs)]):
        k1, k2, k3, k4, k5 = jax.random.split(k, 5)
        w = jax.random.normal(k1, (co, ci, 3), jnp.float32) / np.sqrt(3.0 * ci)
        gamma = 1.0 + 0.1 * jax.random.normal(k2, (co,), jnp.float32)
        beta = 0.1 * jax.random.normal(k3, (co,), jnp.float32)
        mean = 0.1 * jax.random.normal(k4, (co,), jnp.float32)
        var = 0.5 + 0.5 * jnp.abs(jax.random.normal(k5, (co,), jnp.float32))
        units[name] = _fold_unit(w, gamma, beta, mean, var)
    ctot = oc[0] + oc[2] + oc[4] + oc[5]
    wx = jax.random.normal(keys[-2], (ctot, cin), jnp.float32) / np.sqrt(cin)
    bx = 0.1 * jax.random.normal(keys[-1], (ctot,), jnp.float32)
    return units, wx, bx


def pack_kernel_operands(units, wx, bx, cin, oc):
    """Host-side packing.

    w1: six level-1 k=3 convs stacked PLUS the conv_x rows (zeros in the dt=-1/+1 blocks),
        with each row's bias appended as an extra column (matmul RHS carries a ones row).
    w2: the three level-2 k=3 convs as one block-diagonal matrix, bias column appended."""
    c0, c1, c2, c3, c4, c5 = oc
    ctot = c0 + c2 + c4 + c5
    lvl1 = ("conv1", "conv2a_1_2", "conv2a__2", "conv4a_3_4", "conv4a_4_4", "conv6")
    w1 = jnp.concatenate([units[nm][0] for nm in lvl1], axis=0)          # (c1tot, 3*cin)
    b1 = jnp.concatenate([units[nm][1] for nm in lvl1], axis=0)          # (c1tot,)
    zeros = jnp.zeros((ctot, cin), jnp.float32)
    wx_rows = jnp.concatenate([zeros, wx, zeros], axis=1)                # conv_x -> dt=0 block
    w1_full = jnp.concatenate([w1, wx_rows], axis=0)
    b1_full = jnp.concatenate([b1, bx], axis=0)
    w1_packed = jnp.concatenate([w1_full, b1_full[:, None]], axis=1).astype(jnp.bfloat16)

    w2b, b2b = units["conv2b_1_2"]
    w434, b434 = units["conv4b_3_4"]
    w444, b444 = units["conv4b_4_4"]
    K2 = 3 * (c1 + c3 + c4)
    w2 = jnp.zeros((c2 + 2 * c4, K2), jnp.float32)
    w2 = w2.at[0:c2, 0:3 * c1].set(w2b)
    w2 = w2.at[c2:c2 + c4, 3 * c1:3 * (c1 + c3)].set(w434)
    w2 = w2.at[c2 + c4:c2 + 2 * c4, 3 * (c1 + c3):K2].set(w444)
    b2 = jnp.concatenate([b2b, b434, b444], axis=0)
    w2_packed = jnp.concatenate([w2, b2[:, None]], axis=1).astype(jnp.bfloat16)
    return w1_packed, w2_packed


# --------------------------------------------------------------------------- pure-JAX reference

def reference_forward(x_ncthw, units, wx, bx):
    """Reference using the same folded bf16 operands / bf16 bias quantization as the kernel."""
    B, C, T, H, W = x_ncthw.shape
    xb = jnp.transpose(x_ncthw.reshape(B, C, T, H * W), (0, 2, 3, 1)).astype(jnp.bfloat16)

    def qb(b):                                           # kernel carries biases as bf16 columns
        return b.astype(jnp.bfloat16).astype(jnp.float32)

    def unit(a, wb):
        w, b = wb
        Tn = a.shape[1]
        ap = jnp.pad(a.astype(jnp.float32), ((0, 0), (1, 1), (0, 0), (0, 0)))
        ac = jnp.concatenate([ap[:, 0:Tn], ap[:, 1:Tn + 1], ap[:, 2:Tn + 2]],
                             axis=-1).astype(jnp.bfloat16)
        y = jnp.einsum("bthk,ok->btho", ac, w.astype(jnp.bfloat16),
                       preferred_element_type=jnp.float32) + qb(b)
        return jnp.maximum(y, 0.0)

    def pool3(a):
        Tn = a.shape[1]
        ap = jnp.pad(a, ((0, 0), (1, 1), (0, 0), (0, 0)))
        return jnp.maximum(jnp.maximum(ap[:, 0:Tn], ap[:, 1:Tn + 1]), ap[:, 2:Tn + 2])

    out0 = unit(xb, units["conv1"])
    out2 = pool3(unit(unit(xb, units["conv2a_1_2"]), units["conv2b_1_2"])
                 + unit(xb, units["conv2a__2"]))
    out4 = pool3(unit(unit(xb, units["conv4a_3_4"]), units["conv4b_3_4"])
                 + unit(unit(xb, units["conv4a_4_4"]), units["conv4b_4_4"]))
    out5 = unit(xb, units["conv6"])
    cx = jnp.einsum("bthc,oc->btho", xb, wx.astype(jnp.bfloat16),
                    preferred_element_type=jnp.float32) + qb(bx)
    y = jnp.concatenate([out0, out2, out4, out5], axis=-1) + cx
    return jnp.transpose(y, (0, 3, 1, 2)).reshape(B, -1, T, H, W)


# --------------------------------------------------------------------------- main

if __name__ == "__main__":
    B, Cin, T, H, W = 2, 8, 8, 16, 16               # HW = 256 -> lane tiles of 128
    oc = (8, 8, 8, 8, 8, 8)                         # Ctot = 8 + 8 + 8 + 8 = 32

    key = jax.random.PRNGKey(0)
    kx, kp = jax.random.split(key)
    x = jax.random.normal(kx, (B, Cin, T, H, W), jnp.float32)
    units, wx, bx = make_params(kp, Cin, oc)
    w1p, w2p = pack_kernel_operands(units, wx, bx, Cin, oc)

    fwd = jax.jit(lambda xv, a, b: temporal_inception_forward(xv, a, b, oc))
    out = jax.block_until_ready(fwd(x, w1p, w2p))

    ctot = oc[0] + oc[2] + oc[4] + oc[5]
    assert out.shape == (B, ctot, T, H, W), out.shape
    ref = jax.block_until_ready(reference_forward(x, units, wx, bx))
    np.testing.assert_allclose(np.asarray(out), np.asarray(ref), rtol=1e-2, atol=1e-2)

    print("KERNEL_OK")
</pallas_src>

<mosaic_0001>
module attributes {stable_mosaic.version = 11 : i64} {
  func.func @kernel(%arg0: i32, %arg1: memref<1x8x1024xbf16, #tpu.memory_space<vmem>>, %arg2: memref<80x25xbf16, #tpu.memory_space<vmem>>, %arg3: memref<24x73xbf16, #tpu.memory_space<vmem>>, %arg4: memref<1x32x1024xf32, #tpu.memory_space<vmem>>) attributes {dimension_semantics = [#tpu.dimension_semantics<parallel>], iteration_bounds = array<i64: 4>, scalar_prefetch = 0 : i64, scratch_operands = 0 : i64, tpu.core_type = #tpu.core_type<tc>, window_params = [{transform_indices = @transform_0, window_bounds = array<i64: 1, 8, 1024>}, {pipeline_mode = #tpu.pipeline_mode<synchronous>, transform_indices = @transform_1, window_bounds = array<i64: 80, 25>}, {pipeline_mode = #tpu.pipeline_mode<synchronous>, transform_indices = @transform_2, window_bounds = array<i64: 24, 73>}, {transform_indices = @transform_3, window_bounds = array<i64: 1, 32, 1024>}]} {
    %c0 = arith.constant 0 : index
    %c0_0 = arith.constant 0 : index
    %c0_1 = arith.constant 0 : index
    %0 = vector.load %arg1[%c0, %c0_0, %c0_1] : memref<1x8x1024xbf16, #tpu.memory_space<vmem>>, vector<1x8x1024xbf16>
    %1 = vector.shape_cast %0 : vector<1x8x1024xbf16> to vector<8x1024xbf16>
    %cst = arith.constant 1.000000e+00 : bf16
    %2 = vector.broadcast %cst : bf16 to vector<1x1024xbf16>
    %cst_2 = arith.constant 0.000000e+00 : bf16
    %3 = vector.broadcast %cst_2 : bf16 to vector<8x128xbf16>
    %4 = vector.extract_strided_slice %1 {offsets = [0, 0], sizes = [8, 896], strides = [1, 1]} : vector<8x1024xbf16> to vector<8x896xbf16>
    %5 = tpu.concatenate %3, %4 in 1 : vector<8x128xbf16>, vector<8x896xbf16> -> vector<8x1024xbf16>
    %6 = vector.extract_strided_slice %1 {offsets = [0, 128], sizes = [8, 896], strides = [1, 1]} : vector<8x1024xbf16> to vector<8x896xbf16>
    %7 = tpu.concatenate %6, %3 in 1 : vector<8x896xbf16>, vector<8x128xbf16> -> vector<8x1024xbf16>
    %8 = tpu.concatenate %5, %1, %7, %2 in 0 : vector<8x1024xbf16>, vector<8x1024xbf16>, vector<8x1024xbf16>, vector<1x1024xbf16> -> vector<25x1024xbf16>
    %c0_3 = arith.constant 0 : index
    %c0_4 = arith.constant 0 : index
    %9 = vector.load %arg2[%c0_3, %c0_4] : memref<80x25xbf16, #tpu.memory_space<vmem>>, vector<80x25xbf16>
    %cst_5 = arith.constant dense<0.000000e+00> : vector<80x1024xf32>
    %10 = tpu.matmul %9, %8, %cst_5 {dimension_numbers = #tpu.dot_dimension_numbers<[1], [0], [0], [1], [0, 0, 1, 1], [], []>} : vector<80x25xbf16>, vector<25x1024xbf16>, vector<80x1024xf32> -> vector<80x1024xf32>
    %11 = vector.extract_strided_slice %10 {offsets = [48, 0], sizes = [32, 1024], strides = [1, 1]} : vector<80x1024xf32> to vector<32x1024xf32>
    %12 = vector.extract_strided_slice %10 {offsets = [0, 0], sizes = [8, 1024], strides = [1, 1]} : vector<80x1024xf32> to vector<8x1024xf32>
    %cst_6 = arith.constant 0.000000e+00 : f32
    %13 = vector.broadcast %cst_6 : f32 to vector<8x1024xf32>
    %14 = arith.maximumf %12, %13 : vector<8x1024xf32>
    %15 = vector.extract_strided_slice %10 {offsets = [8, 0], sizes = [8, 1024], strides = [1, 1]} : vector<80x1024xf32> to vector<8x1024xf32>
    %cst_7 = arith.constant 0.000000e+00 : f32
    %16 = vector.broadcast %cst_7 : f32 to vector<8x1024xf32>
    %17 = arith.maximumf %15, %16 : vector<8x1024xf32>
    %18 = arith.truncf %17 : vector<8x1024xf32> to vector<8x1024xbf16>
    %19 = vector.extract_strided_slice %10 {offsets = [16, 0], sizes = [8, 1024], strides = [1, 1]} : vector<80x1024xf32> to vector<8x1024xf32>
    %cst_8 = arith.constant 0.000000e+00 : f32
    %20 = vector.broadcast %cst_8 : f32 to vector<8x1024xf32>
    %21 = arith.maximumf %19, %20 : vector<8x1024xf32>
    %22 = vector.extract_strided_slice %10 {offsets = [24, 0], sizes = [8, 1024], strides = [1, 1]} : vector<80x1024xf32> to vector<8x1024xf32>
    %cst_9 = arith.constant 0.000000e+00 : f32
    %23 = vector.broadcast %cst_9 : f32 to vector<8x1024xf32>
    %24 = arith.maximumf %22, %23 : vector<8x1024xf32>
    %25 = arith.truncf %24 : vector<8x1024xf32> to vector<8x1024xbf16>
    %26 = vector.extract_strided_slice %10 {offsets = [32, 0], sizes = [8, 1024], strides = [1, 1]} : vector<80x1024xf32> to vector<8x1024xf32>
    %cst_10 = arith.constant 0.000000e+00 : f32
    %27 = vector.broadcast %cst_10 : f32 to vector<8x1024xf32>
    %28 = arith.maximumf %26, %27 : vector<8x1024xf32>
    %29 = arith.truncf %28 : vector<8x1024xf32> to vector<8x1024xbf16>
    %30 = vector.extract_strided_slice %10 {offsets = [40, 0], sizes = [8, 1024], strides = [1, 1]} : vector<80x1024xf32> to vector<8x1024xf32>
    %cst_11 = arith.constant 0.000000e+00 : f32
    %31 = vector.broadcast %cst_11 : f32 to vector<8x1024xf32>
    %32 = arith.maximumf %30, %31 : vector<8x1024xf32>
    %cst_12 = arith.constant 0.000000e+00 : bf16
    %33 = vector.broadcast %cst_12 : bf16 to vector<8x128xbf16>
    %34 = vector.extract_strided_slice %18 {offsets = [0, 0], sizes = [8, 896], strides = [1, 1]} : vector<8x1024xbf16> to vector<8x896xbf16>
    %35 = tpu.concatenate %33, %34 in 1 : vector<8x128xbf16>, vector<8x896xbf16> -> vector<8x1024xbf16>
    %36 = vector.extract_strided_slice %18 {offsets = [0, 128], sizes = [8, 896], strides = [1, 1]} : vector<8x1024xbf16> to vector<8x896xbf16>
    %37 = tpu.concatenate %36, %33 in 1 : vector<8x896xbf16>, vector<8x128xbf16> -> vector<8x1024xbf16>
    %cst_13 = arith.constant 0.000000e+00 : bf16
    %38 = vector.broadcast %cst_13 : bf16 to vector<8x128xbf16>
    %39 = vector.extract_strided_slice %25 {offsets = [0, 0], sizes = [8, 896], strides = [1, 1]} : vector<8x1024xbf16> to vector<8x896xbf16>
    %40 = tpu.concatenate %38, %39 in 1 : vector<8x128xbf16>, vector<8x896xbf16> -> vector<8x1024xbf16>
    %41 = vector.extract_strided_slice %25 {offsets = [0, 128], sizes = [8, 896], strides = [1, 1]} : vector<8x1024xbf16> to vector<8x896xbf16>
    %42 = tpu.concatenate %41, %38 in 1 : vector<8x896xbf16>, vector<8x128xbf16> -> vector<8x1024xbf16>
    %cst_14 = arith.constant 0.000000e+00 : bf16
    %43 = vector.broadcast %cst_14 : bf16 to vector<8x128xbf16>
    %44 = vector.extract_strided_slice %29 {offsets = [0, 0], sizes = [8, 896], strides = [1, 1]} : vector<8x1024xbf16> to vector<8x896xbf16>
    %45 = tpu.concatenate %43, %44 in 1 : vector<8x128xbf16>, vector<8x896xbf16> -> vector<8x1024xbf16>
    %46 = vector.extract_strided_slice %29 {offsets = [0, 128], sizes = [8, 896], strides = [1, 1]} : vector<8x1024xbf16> to vector<8x896xbf16>
    %47 = tpu.concatenate %46, %43 in 1 : vector<8x896xbf16>, vector<8x128xbf16> -> vector<8x1024xbf16>
    %48 = tpu.concatenate %35, %18, %37, %40, %25, %42, %45, %29, %47, %2 in 0 : vector<8x1024xbf16>, vector<8x1024xbf16>, vector<8x1024xbf16>, vector<8x1024xbf16>, vector<8x1024xbf16>, vector<8x1024xbf16>, vector<8x1024xbf16>, vector<8x1024xbf16>, vector<8x1024xbf16>, vector<1x1024xbf16> -> vector<73x1024xbf16>
    %c0_15 = arith.constant 0 : index
    %c0_16 = arith.constant 0 : index
    %49 = vector.load %arg3[%c0_15, %c0_16] : memref<24x73xbf16, #tpu.memory_space<vmem>>, vector<24x73xbf16>
    %cst_17 = arith.constant dense<0.000000e+00> : vector<24x1024xf32>
    %50 = tpu.matmul %49, %48, %cst_17 {dimension_numbers = #tpu.dot_dimension_numbers<[1], [0], [0], [1], [0, 0, 1, 1], [], []>} : vector<24x73xbf16>, vector<73x1024xbf16>, vector<24x1024xf32> -> vector<24x1024xf32>
    %cst_18 = arith.constant 0.000000e+00 : f32
    %51 = vector.broadcast %cst_18 : f32 to vector<24x1024xf32>
    %52 = arith.maximumf %50, %51 : vector<24x1024xf32>
    %53 = vector.extract_strided_slice %52 {offsets = [0, 0], sizes = [8, 1024], strides = [1, 1]} : vector<24x1024xf32> to vector<8x1024xf32>
    %54 = arith.addf %53, %21 : vector<8x1024xf32>
    %55 = vector.extract_strided_slice %54 {offsets = [0, 0], sizes = [8, 896], strides = [1, 1]} : vector<8x1024xf32> to vector<8x896xf32>
    %56 = vector.extract_strided_slice %54 {offsets = [0, 128], sizes = [8, 896], strides = [1, 1]} : vector<8x1024xf32> to vector<8x896xf32>
    %57 = arith.maximumf %55, %56 : vector<8x896xf32>
    %58 = vector.extract_strided_slice %54 {offsets = [0, 0], sizes = [8, 128], strides = [1, 1]} : vector<8x1024xf32> to vector<8x128xf32>
    %59 = tpu.concatenate %58, %57 in 1 : vector<8x128xf32>, vector<8x896xf32> -> vector<8x1024xf32>
    %60 = vector.extract_strided_slice %54 {offsets = [0, 896], sizes = [8, 128], strides = [1, 1]} : vector<8x1024xf32> to vector<8x128xf32>
    %61 = tpu.concatenate %57, %60 in 1 : vector<8x896xf32>, vector<8x128xf32> -> vector<8x1024xf32>
    %62 = arith.maximumf %59, %61 : vector<8x1024xf32>
    %63 = vector.extract_strided_slice %52 {offsets = [8, 0], sizes = [8, 1024], strides = [1, 1]} : vector<24x1024xf32> to vector<8x1024xf32>
    %64 = vector.extract_strided_slice %52 {offsets = [16, 0], sizes = [8, 1024], strides = [1, 1]} : vector<24x1024xf32> to vector<8x1024xf32>
    %65 = arith.addf %63, %64 : vector<8x1024xf32>
    %66 = vector.extract_strided_slice %65 {offsets = [0, 0], sizes = [8, 896], strides = [1, 1]} : vector<8x1024xf32> to vector<8x896xf32>
    %67 = vector.extract_strided_slice %65 {offsets = [0, 128], sizes = [8, 896], strides = [1, 1]} : vector<8x1024xf32> to vector<8x896xf32>
    %68 = arith.maximumf %66, %67 : vector<8x896xf32>
    %69 = vector.extract_strided_slice %65 {offsets = [0, 0], sizes = [8, 128], strides = [1, 1]} : vector<8x1024xf32> to vector<8x128xf32>
    %70 = tpu.concatenate %69, %68 in 1 : vector<8x128xf32>, vector<8x896xf32> -> vector<8x1024xf32>
    %71 = vector.extract_strided_slice %65 {offsets = [0, 896], sizes = [8, 128], strides = [1, 1]} : vector<8x1024xf32> to vector<8x128xf32>
    %72 = tpu.concatenate %68, %71 in 1 : vector<8x896xf32>, vector<8x128xf32> -> vector<8x1024xf32>
    %73 = arith.maximumf %70, %72 : vector<8x1024xf32>
    %74 = vector.extract_strided_slice %11 {offsets = [0, 0], sizes = [8, 1024], strides = [1, 1]} : vector<32x1024xf32> to vector<8x1024xf32>
    %75 = arith.addf %14, %74 : vector<8x1024xf32>
    %c0_19 = arith.constant 0 : index
    %c0_20 = arith.constant 0 : index
    %c0_21 = arith.constant 0 : index
    %76 = vector.load %arg4[%c0_19, %c0_20, %c0_21] : memref<1x32x1024xf32, #tpu.memory_space<vmem>>, vector<1x8x1024xf32>
    %77 = vector.shape_cast %76 : vector<1x8x1024xf32> to vector<8x1024xf32>
    %78 = vector.shape_cast %75 : vector<8x1024xf32> to vector<1x8x1024xf32>
    tpu.vector_store %arg4[%c0_19, %c0_20, %c0_21], %78 {strides = array<i32>} : memref<1x32x1024xf32, #tpu.memory_space<vmem>>, vector<1x8x1024xf32>,
    %79 = vector.extract_strided_slice %11 {offsets = [8, 0], sizes = [8, 1024], strides = [1, 1]} : vector<32x1024xf32> to vector<8x1024xf32>
    %80 = arith.addf %62, %79 : vector<8x1024xf32>
    %c0_22 = arith.constant 0 : index
    %c8 = arith.constant 8 : index
    %c0_23 = arith.constant 0 : index
    %81 = vector.load %arg4[%c0_22, %c8, %c0_23] : memref<1x32x1024xf32, #tpu.memory_space<vmem>>, vector<1x8x1024xf32>
    %82 = vector.shape_cast %81 : vector<1x8x1024xf32> to vector<8x1024xf32>
    %83 = vector.shape_cast %80 : vector<8x1024xf32> to vector<1x8x1024xf32>
    tpu.vector_store %arg4[%c0_22, %c8, %c0_23], %83 {strides = array<i32>} : memref<1x32x1024xf32, #tpu.memory_space<vmem>>, vector<1x8x1024xf32>,
    %84 = vector.extract_strided_slice %11 {offsets = [16, 0], sizes = [8, 1024], strides = [1, 1]} : vector<32x1024xf32> to vector<8x1024xf32>
    %85 = arith.addf %73, %84 : vector<8x1024xf32>
    %c0_24 = arith.constant 0 : index
    %c16 = arith.constant 16 : index
    %c0_25 = arith.constant 0 : index
    %86 = vector.load %arg4[%c0_24, %c16, %c0_25] : memref<1x32x1024xf32, #tpu.memory_space<vmem>>, vector<1x8x1024xf32>
    %87 = vector.shape_cast %86 : vector<1x8x1024xf32> to vector<8x1024xf32>
    %88 = vector.shape_cast %85 : vector<8x1024xf32> to vector<1x8x1024xf32>
    tpu.vector_store %arg4[%c0_24, %c16, %c0_25], %88 {strides = array<i32>} : memref<1x32x1024xf32, #tpu.memory_space<vmem>>, vector<1x8x1024xf32>,
    %89 = vector.extract_strided_slice %11 {offsets = [24, 0], sizes = [8, 1024], strides = [1, 1]} : vector<32x1024xf32> to vector<8x1024xf32>
    %90 = arith.addf %32, %89 : vector<8x1024xf32>
    %c0_26 = arith.constant 0 : index
    %c24 = arith.constant 24 : index
    %c0_27 = arith.constant 0 : index
    %91 = vector.load %arg4[%c0_26, %c24, %c0_27] : memref<1x32x1024xf32, #tpu.memory_space<vmem>>, vector<1x8x1024xf32>
    %92 = vector.shape_cast %91 : vector<1x8x1024xf32> to vector<8x1024xf32>
    %93 = vector.shape_cast %90 : vector<8x1024xf32> to vector<1x8x1024xf32>
    tpu.vector_store %arg4[%c0_26, %c24, %c0_27], %93 {strides = array<i32>} : memref<1x32x1024xf32, #tpu.memory_space<vmem>>, vector<1x8x1024xf32>,
    return
  }
  func.func @transform_0(%arg0: i32) -> (i32, i32, i32) {
    %c0_i32 = arith.constant 0 : i32
    %c0_i32_0 = arith.constant 0 : i32
    %c0_i32_1 = arith.constant 0 : i32
    return %arg0, %c0_i32, %c0_i32_0 : i32, i32, i32
  }
  func.func @transform_1(%arg0: i32) -> (i32, i32) {
    %c0_i32 = arith.constant 0 : i32
    %c0_i32_0 = arith.constant 0 : i32
    %c0_i32_1 = arith.constant 0 : i32
    return %c0_i32, %c0_i32_0 : i32, i32
  }
  func.func @transform_2(%arg0: i32) -> (i32, i32) {
    %c0_i32 = arith.constant 0 : i32
    %c0_i32_0 = arith.constant 0 : i32
    %c0_i32_1 = arith.constant 0 : i32
    return %c0_i32, %c0_i32_0 : i32, i32
  }
  func.func @transform_3(%arg0: i32) -> (i32, i32, i32) {
    %c0_i32 = arith.constant 0 : i32
    %c0_i32_0 = arith.constant 0 : i32
    %c0_i32_1 = arith.constant 0 : i32
    return %arg0, %c0_i32, %c0_i32_0 : i32, i32, i32
  }
}

</mosaic_0001>

<llo_original>
// kernel: _lambda_.1
$region0: #{_lambda_.1}
  #allocation0 [shape = 'u32[]', space=smem, size = 0x4, offset = 0x4, fixed_abs, tag = 'smem constant byte address 0x4 - core index']
  #allocation1 [shape = 'u32[144,128]{1,0:T(1,128)}', space=vmem, size = 0x12000, scoped, tag = 'internal scratch']
  %s0 = inlined_call_operand.vmem [shape: bf16[4,8,1024], index: 0, kind: input, shape index: {}]
  %s1 = inlined_call_operand.vmem [shape: bf16[80,25], index: 1, kind: input, shape index: {}]
  %s2 = inlined_call_operand.vmem [shape: bf16[24,73], index: 2, kind: input, shape index: {}]
  %s3 = inlined_call_operand.vmem [shape: f32[4,32,1024], index: 3, kind: output, shape index: {}]
  %s4 = sld [smem:[#allocation0]]
  $region45: #{_lambda_.1} parent=0
    _
  %s6 = ssub.s32 1, %s4
  %s7 = scalar_select 0, %s6, %s4
  loop: start=0, step=1, limit=6
  $region2: #{_lambda_.1} parent=0 // loop_pre_header
    _
  $region3: #{_lambda_.1} parent=0 // loop_header
    %s9 = sphi 0, %s13
    %p10 = scmp.ge.s32.totalorder %s9, 6
    %s19 = sphi 0, %s21
    %s22 = sphi 0, %s19
    %s23 = sphi 0, %s22
    %s39 = sphi 0, %s23
    %s43 = sphi 0, %s43
    %s45 = sphi 0, %s43
    %s46 = sphi 0, %s45
    %s60 = sphi 0, %s46
    %s64 = sphi 0, %s64
    %s66 = sphi 0, %s64
    %s67 = sphi 0, %s66
    %s81 = sphi 0, %s67
    %s87 = sphi 0, %s89
    %s90 = sphi 0, %s87
    %s91 = sphi 0, %s90
    %s107 = sphi 0, %s91
  $region4: #{_lambda_.1} parent=0 // loop_header_branch
    %12 = sbr.rel (%p10) target = $region8
  $region5: #{_lambda_.1} parent=0 // loop_body
    %s14 = ssub.s32 %s9, 1
    %s15 = ssub.s32 %s9, 2
    %s16 = sadd.s32 %s9, 1
    %s17 = ssub.s32 %s9, %s16
    %p18 = scmp.eq.s32.totalorder %s17, 0
    %s20 = sadd.s32 %s19, 1
    %s21 = scalar_select %p18, %s19, %s20
    %p24 = pneg %p18
    %p25 = scmp.eq.s32.totalorder %s9, 3
    %p26 = por %p24, %p25
    %p27 = scmp.ne.s32.totalorder %s19, %s22
    %p28 = scmp.eq.s32.totalorder %s9, 0
    %p29 = por %p27, %p28
    %p30 = scmp.ne.s32.totalorder %s19, %s22
    %p31 = scmp.eq.s32.totalorder %s14, 3
    %p32 = por %p30, %p31
    %p33 = scmp.ne.s32.totalorder %s22, %s23
    %p34 = scmp.eq.s32.totalorder %s14, 0
    %p35 = por %p33, %p34
    %p36 = scmp.ne.s32.totalorder %s22, %s23
    %p37 = scmp.eq.s32.totalorder %s15, 3
    %p38 = por %p36, %p37
    %p40 = scmp.ne.s32.totalorder %s23, %s39
    %p41 = scmp.eq.s32.totalorder %s15, 0
    %p42 = por %p40, %p41
    %s44 = sadd.s32 %s43, 1
    %p47 = scmp.eq.s32.totalorder %s9, 3
    %p48 = scmp.ne.s32.totalorder %s43, %s45
    %p49 = scmp.eq.s32.totalorder %s9, 0
    %p50 = por %p48, %p49
    %p51 = scmp.ne.s32.totalorder %s43, %s45
    %p52 = scmp.eq.s32.totalorder %s14, 3
    %p53 = por %p51, %p52
    %p54 = scmp.ne.s32.totalorder %s45, %s46
    %p55 = scmp.eq.s32.totalorder %s14, 0
    %p56 = por %p54, %p55
    %p57 = scmp.ne.s32.totalorder %s45, %s46
    %p58 = scmp.eq.s32.totalorder %s15, 3
    %p59 = por %p57, %p58
    %p61 = scmp.ne.s32.totalorder %s46, %s60
    %p62 = scmp.eq.s32.totalorder %s15, 0
    %p63 = por %p61, %p62
    %s65 = sadd.s32 %s64, 1
    %p68 = scmp.eq.s32.totalorder %s9, 3
    %p69 = scmp.ne.s32.totalorder %s64, %s66
    %p70 = scmp.eq.s32.totalorder %s9, 0
    %p71 = por %p69, %p70
    %p72 = scmp.ne.s32.totalorder %s64, %s66
    %p73 = scmp.eq.s32.totalorder %s14, 3
    %p74 = por %p72, %p73
    %p75 = scmp.ne.s32.totalorder %s66, %s67
    %p76 = scmp.eq.s32.totalorder %s14, 0
    %p77 = por %p75, %p76
    %p78 = scmp.ne.s32.totalorder %s66, %s67
    %p79 = scmp.eq.s32.totalorder %s15, 3
    %p80 = por %p78, %p79
    %p82 = scmp.ne.s32.totalorder %s67, %s81
    %p83 = scmp.eq.s32.totalorder %s15, 0
    %p84 = por %p82, %p83
    %s85 = ssub.s32 %s9, %s16
    %p86 = scmp.eq.s32.totalorder %s85, 0
    %s88 = sadd.s32 %s87, 1
    %s89 = scalar_select %p86, %s87, %s88
    %p92 = pneg %p86
    %p93 = scmp.eq.s32.totalorder %s9, 3
    %p94 = por %p92, %p93
    %p95 = scmp.ne.s32.totalorder %s87, %s90
    %p96 = scmp.eq.s32.totalorder %s9, 0
    %p97 = por %p95, %p96
    %p98 = scmp.ne.s32.totalorder %s87, %s90
    %p99 = scmp.eq.s32.totalorder %s14, 3
    %p100 = por %p98, %p99
    %p101 = scmp.ne.s32.totalorder %s90, %s91
    %p102 = scmp.eq.s32.totalorder %s14, 0
    %p103 = por %p101, %p102
    %p104 = scmp.ne.s32.totalorder %s90, %s91
    %p105 = scmp.eq.s32.totalorder %s15, 3
    %p106 = por %p104, %p105
    %p108 = scmp.ne.s32.totalorder %s91, %s107
    %p109 = scmp.eq.s32.totalorder %s15, 0
    %p110 = por %p108, %p109
    %p111 = scmp.le.s32.totalorder 1, %s9
    %p112 = scmp.lt.s32.totalorder %s9, 5
    %p113 = pnand %p111, %p112
    %p114 = pneg %p113
    // Predicated region
    $region9: #{_lambda_.1} parent=5 // pred_check
      _
    $region10: #{_lambda_.1} parent=5 // pred_check_branch
      %116 = sbr.rel (%p113) target = $region12
    $region11: #{_lambda_.1} parent=5 // pred_region
      %s117 = ssub.s32 %s9, 1
      // Predicated region
      $region13: #{_lambda_.1} parent=11 // pred_check
        %p118 = pneg %p56
      $region14: #{_lambda_.1} parent=11 // pred_check_branch
        %120 = sbr.rel (%p118) target = $region16
      $region15: #{_lambda_.1} parent=11 // pred_region
        _
      $region16: #{_lambda_.1} parent=11 // pred_fallthru
        _
      // Predicated region
      $region17: #{_lambda_.1} parent=11 // pred_check
        %p121 = pneg %p77
      $region18: #{_lambda_.1} parent=11 // pred_check_branch
        %123 = sbr.rel (%p121) target = $region20
      $region19: #{_lambda_.1} parent=11 // pred_region
        _
      $region20: #{_lambda_.1} parent=11 // pred_fallthru
        _
    $region12: #{_lambda_.1} parent=5 // pred_fallthru
      _
    %p124 = scmp.lt.s32.totalorder %s9, 4
    // Predicated region
    $region21: #{_lambda_.1} parent=5 // pred_check
      %p125 = pneg %p124
    $region22: #{_lambda_.1} parent=5 // pred_check_branch
      %127 = sbr.rel (%p125) target = $region24
    $region23: #{_lambda_.1} parent=5 // pred_region
      // Predicated region
      $region25: #{_lambda_.1} parent=23 // pred_check
        %p128 = pneg %p29
      $region26: #{_lambda_.1} parent=23 // pred_check_branch
        %130 = sbr.rel (%p128) target = $region28
      $region27: #{_lambda_.1} parent=23 // pred_region
        %p131 = scmp.lt.s32.totalorder %s9, 3
        %s132 = scalar_select %p131, %s9, 3
        %s133 = smul.addr %s132, 8
        %s134 = smul.addr %s133, 4
        %s135 = scalar_lea.vmem %s0, %s134
      $region28: #{_lambda_.1} parent=23 // pred_fallthru
        _
    $region24: #{_lambda_.1} parent=5 // pred_fallthru
      _
    %p136 = scmp.le.s32.totalorder 1, %s9
    %p137 = scmp.lt.s32.totalorder %s9, 5
    %p138 = pnand %p136, %p137
    %p139 = pneg %p138
    // Predicated region
    $region29: #{_lambda_.1} parent=5 // pred_check
      _
    $region30: #{_lambda_.1} parent=5 // pred_check_branch
      %141 = sbr.rel (%p138) target = $region32
    $region31: #{_lambda_.1} parent=5 // pred_region
      %s142 = ssub.s32 %s9, 1
      %p143 = scmp.lt.s32.totalorder %s14, 3
      %s144 = scalar_select %p143, %s14, 3
      %s145 = smul.addr %s144, 8
      %s146 = smul.addr %s145, 4
      %s147 = scalar_lea.vmem %s0, %s146
      %p148 = pneg %p35
      %p149 = pneg %p32
      %p150 = pneg %p56
      %p151 = pneg %p53
      %p152 = pneg %p77
      %p153 = pneg %p74
      %p154 = pneg %p103
      %p155 = pneg %p100
      %p156 = scmp.lt.s32.totalorder %s14, 3
      %s157 = scalar_select %p156, %s14, 3
      %s158 = smul.addr %s157, 32
      %s159 = smul.addr %s158, 8
      %s160 = scalar_lea.vmem %s3, %s159
      %p161 = scmp.lt.s32.totalorder %s14, 3
      %s162 = scalar_select %p161, %s14, 3
      %s163 = smul.addr %s162, 8
      %s164 = smul.addr %s163, 4
      %s165 = scalar_lea.vmem %s0, %s164
      %p166 = scmp.lt.s32.totalorder %s14, 3
      %s167 = scalar_select %p166, %s14, 3
      %s168 = smul.addr %s167, 32
      %s169 = smul.addr %s168, 8
      %s170 = scalar_lea.vmem %s3, %s169
      %v173 = vld [vmem:[%s165] sm:$0xff]
      %v174 = vld [vmem:[%s165 + $0x8] sm:$0xff]
      %v175 = vld [vmem:[%s165 + $0x10] sm:$0xff]
      %v176 = vld [vmem:[%s165 + $0x18] sm:$0xff]
      %v181 = vunpack.c.l.b16 %v173
      %v182 = vunpack.c.h.b16 %v173
      %v183 = vunpack.c.l.b16 %v174
      %v184 = vunpack.c.h.b16 %v174
      %v185 = vunpack.c.l.b16 %v175
      %v186 = vunpack.c.h.b16 %v175
      %v187 = vunpack.c.l.b16 %v176
      %v188 = vpack.c.b16 %v181, %v181
      %v189 = vpack.c.b16 %v182, %v182
      %v190 = vpack.c.b16 %v183, %v183
      %v191 = vpack.c.b16 %v184, %v184
      %v192 = vpack.c.b16 %v185, %v185
      %v193 = vpack.c.b16 %v186, %v186
      %v194 = vpack.c.b16 %v187, %v187
      %v195 = vunpack.c.h.b16 %v176
      %v196 = vpack.c.b16 %v195, %v195
      %vm197 = vcmask 1043456
      %v200 = vsel %vm197, 0, %v188
      %v203 = vsel %vm197, %v188, %v189
      %v206 = vsel %vm197, %v189, %v190
      %v209 = vsel %vm197, %v190, %v191
      %v212 = vsel %vm197, %v191, %v192
      %v215 = vsel %vm197, %v192, %v193
      %v218 = vsel %vm197, %v193, %v194
      %v221 = vsel %vm197, %v194, %v196
      %v224 = vsel %vm197, %v189, 1065369472
      %v225 = vsel %vm197, %v190, 1065369472
      %v226 = vsel %vm197, %v191, 1065369472
      %v227 = vsel %vm197, %v192, 1065369472
      %v228 = vsel %vm197, %v193, 1065369472
      %v229 = vsel %vm197, %v194, 1065369472
      %v230 = vsel %vm197, %v196, 1065369472
      %v231 = vsel %vm197, 0, 1065369472
      %v232 = vld [vmem:[%s1] sm:$0xf]
      %v233 = vld [vmem:[%s1 + $0x4] sm:$0xf]
      %v234 = vld [vmem:[%s1 + $0x8] sm:$0xf]
      %v235 = vld [vmem:[%s1 + $0xc] sm:$0xf]
      %v236 = vld [vmem:[%s1 + $0x10] sm:$0xf]
      %v237 = vld [vmem:[%s1 + $0x14] sm:$0xf]
      %v238 = vld [vmem:[%s1 + $0x18] sm:$0xf]
      %v239 = vld [vmem:[%s1 + $0x1c] sm:$0xf]
      %v240 = vld [vmem:[%s1 + $0x20] sm:$0xf]
      %v241 = vld [vmem:[%s1 + $0x24] sm:$0xf]
      %v252 = vunpack.c.l.b16 %v232
      %v253 = vunpack.c.l.b16 %v233
      %v254 = vunpack.c.l.b16 %v234
      %v255 = vunpack.c.l.b16 %v235
      %v256 = vunpack.c.l.b16 %v236
      %v257 = vunpack.c.l.b16 %v237
      %v258 = vunpack.c.l.b16 %v238
      %v259 = vunpack.c.l.b16 %v239
      %v260 = vunpack.c.l.b16 %v240
      %v261 = vunpack.c.l.b16 %v241
      %v262 = vpack.c.b16 %v253, %v252
      %v263 = vpack.c.b16 %v255, %v254
      %v264 = vpack.c.b16 %v257, %v256
      %v265 = vpack.c.b16 %v259, %v258
      %v266 = vpack.c.b16 %v261, %v260
      %vm267 = vcmask 203776
      %v269 = vsel %vm267, %v262, 0
      %v272 = vsel %vm267, %v263, 0
      %v275 = vsel %vm267, %v264, 0
      %v278 = vsel %vm267, %v265, 0
      %v281 = vsel %vm267, %v266, 0
      %vm283 = vcmask 1044480
      %v284 = vsel %vm197, 4294967295, 65535
      %v285 = vsel %vm283, %v284, 0
      %v286 = vand.u32 %v224, %v285
      %v288 = vand.u32 %v225, %v285
      %v290 = vand.u32 %v226, %v285
      %v292 = vand.u32 %v227, %v285
      %v294 = vand.u32 %v228, %v285
      %v296 = vand.u32 %v229, %v285
      %v298 = vand.u32 %v230, %v285
      %v300 = vand.u32 %v231, %v285
      %302 = vmatprep.subr.bf16.mxu0 0
      %303 = vmatpush1.bf16.msra.mxu0 0
      %304 = vmatprep.subr.bf16.mxu0 0
      %305 = vmatpush1.bf16.msra.mxu0 0
      %306 = vmatprep.subr.bf16.mxu0 0
      %307 = vmatpush1.bf16.msra.mxu0 0
      %308 = vmatprep.subr.bf16.mxu0 0
      %309 = vmatpush1.bf16.msra.mxu0 0
      %310 = vmatprep.subr.bf16.mxu0 0
      %311 = vmatpush1.bf16.msra.mxu0 0
      %312 = vmatprep.subr.bf16.mxu0 0
      %313 = vmatpush1.bf16.msra.mxu0 0
      %314 = vmatprep.subr.bf16.mxu0 %v288
      %315 = vmatpush1.bf16.msra.mxu0 %v286
      %316 = vmatprep.subr.bf16.mxu0 %v203
      %317 = vmatpush1.bf16.msra.mxu0 %v200
      %318 = vmatprep.subr.bf16.mxu0 0
      %319 = vmatpush2.bf16.msra.mxu0 0
      %320 = vmatprep.subr.bf16.mxu0 0
      %321 = vmatpush2.bf16.msra.mxu0 0
      %322 = vmatprep.subr.bf16.mxu0 0
      %323 = vmatpush2.bf16.msra.mxu0 0
      %324 = vmatprep.subr.bf16.mxu0 0
      %325 = vmatpush2.bf16.msra.mxu0 0
      %326 = vmatprep.subr.bf16.mxu0 0
      %327 = vmatpush2.bf16.msra.mxu0 0
      %328 = vmatprep.subr.bf16.mxu0 0
      %329 = vmatpush2.bf16.msra.mxu0 0
      %330 = vmatprep.subr.bf16.mxu0 0
      %331 = vmatpush2.bf16.msra.mxu0 0
      %332 = vmatprep.subr.bf16.mxu0 0
      %333 = vmatpush2.bf16.msra.mxu0 0
      %334 = vmatprep.mubr.bf16.mxu0 0
      %335 = vmatmul.mubr.bf16.gmra.mxu0 %v269
      %v336 = vpop.f32.mrf.mxu0
      %v337 = vadd.f32 0.0, %v336
      %v338 = vpop.f32.mrf.mxu0
      %v339 = vadd.f32 0.0, %v338
      %v340 = vpop.f32.mrf.mxu0
      %v341 = vadd.f32 0.0, %v340
      %v342 = vpop.f32.mrf.mxu0
      %v343 = vadd.f32 0.0, %v342
      %344 = vmatprep.mubr.bf16.mxu0 0
      %345 = vmatmul.mubr.bf16.gmra.mxu0 %v272
      %v346 = vpop.f32.mrf.mxu0
      %v347 = vadd.f32 0.0, %v346
      %v348 = vpop.f32.mrf.mxu0
      %v349 = vadd.f32 0.0, %v348
      %v350 = vpop.f32.mrf.mxu0
      %v351 = vadd.f32 0.0, %v350
      %v352 = vpop.f32.mrf.mxu0
      %v353 = vadd.f32 0.0, %v352
      %354 = vmatprep.mubr.bf16.mxu0 0
      %355 = vmatmul.mubr.bf16.gmra.mxu0 %v275
      %v356 = vpop.f32.mrf.mxu0
      %v357 = vadd.f32 0.0, %v356
      %v358 = vpop.f32.mrf.mxu0
      %v359 = vadd.f32 0.0, %v358
      %v360 = vpop.f32.mrf.mxu0
      %v361 = vadd.f32 0.0, %v360
      %v362 = vpop.f32.mrf.mxu0
      %v363 = vadd.f32 0.0, %v362
      %364 = vmatprep.mubr.bf16.mxu0 0
      %365 = vmatmul.mubr.bf16.gmra.mxu0 %v278
      %v366 = vpop.f32.mrf.mxu0
      %v367 = vadd.f32 0.0, %v366
      %v368 = vpop.f32.mrf.mxu0
      %v369 = vadd.f32 0.0, %v368
      %v370 = vpop.f32.mrf.mxu0
      %v371 = vadd.f32 0.0, %v370
      %v372 = vpop.f32.mrf.mxu0
      %v373 = vadd.f32 0.0, %v372
      %374 = vmatprep.mubr.bf16.mxu0 0
      %375 = vmatmul.mubr.bf16.gmra.mxu0 %v281
      %v376 = vpop.f32.mrf.mxu0
      %v377 = vadd.f32 0.0, %v376
      %v378 = vpop.f32.mrf.mxu0
      %v379 = vadd.f32 0.0, %v378
      %v380 = vpop.f32.mrf.mxu0
      %v381 = vadd.f32 0.0, %v380
      %v382 = vpop.f32.mrf.mxu0
      %v383 = vadd.f32 0.0, %v382
      %384 = vdwg.mxu0
      %385 = vmatprep.subr.bf16.mxu0 0
      %386 = vmatpush1.bf16.msra.mxu0 0
      %387 = vmatprep.subr.bf16.mxu0 0
      %388 = vmatpush1.bf16.msra.mxu0 0
      %389 = vmatprep.subr.bf16.mxu0 0
      %390 = vmatpush1.bf16.msra.mxu0 0
      %391 = vmatprep.subr.bf16.mxu0 0
      %392 = vmatpush1.bf16.msra.mxu0 0
      %393 = vmatprep.subr.bf16.mxu0 0
      %394 = vmatpush1.bf16.msra.mxu0 0
      %395 = vmatprep.subr.bf16.mxu0 0
      %396 = vmatpush1.bf16.msra.mxu0 0
      %397 = vmatprep.subr.bf16.mxu0 %v292
      %398 = vmatpush1.bf16.msra.mxu0 %v290
      %399 = vmatprep.subr.bf16.mxu0 %v209
      %400 = vmatpush1.bf16.msra.mxu0 %v206
      %401 = vmatprep.subr.bf16.mxu0 0
      %402 = vmatpush2.bf16.msra.mxu0 0
      %403 = vmatprep.subr.bf16.mxu0 0
      %404 = vmatpush2.bf16.msra.mxu0 0
      %405 = vmatprep.subr.bf16.mxu0 0
      %406 = vmatpush2.bf16.msra.mxu0 0
      %407 = vmatprep.subr.bf16.mxu0 0
      %408 = vmatpush2.bf16.msra.mxu0 0
      %409 = vmatprep.subr.bf16.mxu0 0
      %410 = vmatpush2.bf16.msra.mxu0 0
      %411 = vmatprep.subr.bf16.mxu0 0
      %412 = vmatpush2.bf16.msra.mxu0 0
      %413 = vmatprep.subr.bf16.mxu0 0
      %414 = vmatpush2.bf16.msra.mxu0 0
      %415 = vmatprep.subr.bf16.mxu0 0
      %416 = vmatpush2.bf16.msra.mxu0 0
      %417 = vmatprep.mubr.bf16.mxu0 0
      %418 = vmatmul.mubr.bf16.gmra.mxu0 %v269
      %v419 = vpop.f32.mrf.mxu0
      %v420 = vadd.f32 0.0, %v419
      %v421 = vpop.f32.mrf.mxu0
      %v422 = vadd.f32 0.0, %v421
      %v423 = vpop.f32.mrf.mxu0
      %v424 = vadd.f32 0.0, %v423
      %v425 = vpop.f32.mrf.mxu0
      %v426 = vadd.f32 0.0, %v425
      %427 = vmatprep.mubr.bf16.mxu0 0
      %428 = vmatmul.mubr.bf16.gmra.mxu0 %v272
      %v429 = vpop.f32.mrf.mxu0
      %v430 = vadd.f32 0.0, %v429
      %v431 = vpop.f32.mrf.mxu0
      %v432 = vadd.f32 0.0, %v431
      %v433 = vpop.f32.mrf.mxu0
      %v434 = vadd.f32 0.0, %v433
      %v435 = vpop.f32.mrf.mxu0
      %v436 = vadd.f32 0.0, %v435
      %437 = vmatprep.mubr.bf16.mxu0 0
      %438 = vmatmul.mubr.bf16.gmra.mxu0 %v275
      %v439 = vpop.f32.mrf.mxu0
      %v440 = vadd.f32 0.0, %v439
      %v441 = vpop.f32.mrf.mxu0
      %v442 = vadd.f32 0.0, %v441
      %v443 = vpop.f32.mrf.mxu0
      %v444 = vadd.f32 0.0, %v443
      %v445 = vpop.f32.mrf.mxu0
      %v446 = vadd.f32 0.0, %v445
      %447 = vmatprep.mubr.bf16.mxu0 0
      %448 = vmatmul.mubr.bf16.gmra.mxu0 %v278
      %v449 = vpop.f32.mrf.mxu0
      %v450 = vadd.f32 0.0, %v449
      %v451 = vpop.f32.mrf.mxu0
      %v452 = vadd.f32 0.0, %v451
      %v453 = vpop.f32.mrf.mxu0
      %v454 = vadd.f32 0.0, %v453
      %v455 = vpop.f32.mrf.mxu0
      %v456 = vadd.f32 0.0, %v455
      %457 = vmatprep.mubr.bf16.mxu0 0
      %458 = vmatmul.mubr.bf16.gmra.mxu0 %v281
      %v459 = vpop.f32.mrf.mxu0
      %v460 = vadd.f32 0.0, %v459
      %v461 = vpop.f32.mrf.mxu0
      %v462 = vadd.f32 0.0, %v461
      %v463 = vpop.f32.mrf.mxu0
      %v464 = vadd.f32 0.0, %v463
      %v465 = vpop.f32.mrf.mxu0
      %v466 = vadd.f32 0.0, %v465
      %467 = vdwg.mxu0
      %468 = vmatprep.subr.bf16.mxu0 0
      %469 = vmatpush1.bf16.msra.mxu0 0
      %470 = vmatprep.subr.bf16.mxu0 0
      %471 = vmatpush1.bf16.msra.mxu0 0
      %472 = vmatprep.subr.bf16.mxu0 0
      %473 = vmatpush1.bf16.msra.mxu0 0
      %474 = vmatprep.subr.bf16.mxu0 0
      %475 = vmatpush1.bf16.msra.mxu0 0
      %476 = vmatprep.subr.bf16.mxu0 0
      %477 = vmatpush1.bf16.msra.mxu0 0
      %478 = vmatprep.subr.bf16.mxu0 0
      %479 = vmatpush1.bf16.msra.mxu0 0
      %480 = vmatprep.subr.bf16.mxu0 %v296
      %481 = vmatpush1.bf16.msra.mxu0 %v294
      %482 = vmatprep.subr.bf16.mxu0 %v215
      %483 = vmatpush1.bf16.msra.mxu0 %v212
      %484 = vmatprep.subr.bf16.mxu0 0
      %485 = vmatpush2.bf16.msra.mxu0 0
      %486 = vmatprep.subr.bf16.mxu0 0
      %487 = vmatpush2.bf16.msra.mxu0 0
      %488 = vmatprep.subr.bf16.mxu0 0
      %489 = vmatpush2.bf16.msra.mxu0 0
      %490 = vmatprep.subr.bf16.mxu0 0
      %491 = vmatpush2.bf16.msra.mxu0 0
      %492 = vmatprep.subr.bf16.mxu0 0
      %493 = vmatpush2.bf16.msra.mxu0 0
      %494 = vmatprep.subr.bf16.mxu0 0
      %495 = vmatpush2.bf16.msra.mxu0 0
      %496 = vmatprep.subr.bf16.mxu0 0
      %497 = vmatpush2.bf16.msra.mxu0 0
      %498 = vmatprep.subr.bf16.mxu0 0
      %499 = vmatpush2.bf16.msra.mxu0 0
      %500 = vmatprep.mubr.bf16.mxu0 0
      %501 = vmatmul.mubr.bf16.gmra.mxu0 %v269
      %v502 = vpop.f32.mrf.mxu0
      %v503 = vadd.f32 0.0, %v502
      %v504 = vpop.f32.mrf.mxu0
      %v505 = vadd.f32 0.0, %v504
      %v506 = vpop.f32.mrf.mxu0
      %v507 = vadd.f32 0.0, %v506
      %v508 = vpop.f32.mrf.mxu0
      %v509 = vadd.f32 0.0, %v508
      %510 = vmatprep.mubr.bf16.mxu0 0
      %511 = vmatmul.mubr.bf16.gmra.mxu0 %v272
      %v512 = vpop.f32.mrf.mxu0
      %v513 = vadd.f32 0.0, %v512
      %v514 = vpop.f32.mrf.mxu0
      %v515 = vadd.f32 0.0, %v514
      %v516 = vpop.f32.mrf.mxu0
      %v517 = vadd.f32 0.0, %v516
      %v518 = vpop.f32.mrf.mxu0
      %v519 = vadd.f32 0.0, %v518
      %520 = vmatprep.mubr.bf16.mxu0 0
      %521 = vmatmul.mubr.bf16.gmra.mxu0 %v275
      %v522 = vpop.f32.mrf.mxu0
      %v523 = vadd.f32 0.0, %v522
      %v524 = vpop.f32.mrf.mxu0
      %v525 = vadd.f32 0.0, %v524
      %v526 = vpop.f32.mrf.mxu0
      %v527 = vadd.f32 0.0, %v526
      %v528 = vpop.f32.mrf.mxu0
      %v529 = vadd.f32 0.0, %v528
      %530 = vmatprep.mubr.bf16.mxu0 0
      %531 = vmatmul.mubr.bf16.gmra.mxu0 %v278
      %v532 = vpop.f32.mrf.mxu0
      %v533 = vadd.f32 0.0, %v532
      %v534 = vpop.f32.mrf.mxu0
      %v535 = vadd.f32 0.0, %v534
      %v536 = vpop.f32.mrf.mxu0
      %v537 = vadd.f32 0.0, %v536
      %v538 = vpop.f32.mrf.mxu0
      %v539 = vadd.f32 0.0, %v538
      %540 = vmatprep.mubr.bf16.mxu0 0
      %541 = vmatmul.mubr.bf16.gmra.mxu0 %v281
      %v542 = vpop.f32.mrf.mxu0
      %v543 = vadd.f32 0.0, %v542
      %v544 = vpop.f32.mrf.mxu0
      %v545 = vadd.f32 0.0, %v544
      %v546 = vpop.f32.mrf.mxu0
      %v547 = vadd.f32 0.0, %v546
      %v548 = vpop.f32.mrf.mxu0
      %v549 = vadd.f32 0.0, %v548
      %550 = vdwg.mxu0
      %551 = vmatprep.subr.bf16.mxu0 0
      %552 = vmatpush1.bf16.msra.mxu0 0
      %553 = vmatprep.subr.bf16.mxu0 0
      %554 = vmatpush1.bf16.msra.mxu0 0
      %555 = vmatprep.subr.bf16.mxu0 0
      %556 = vmatpush1.bf16.msra.mxu0 0
      %557 = vmatprep.subr.bf16.mxu0 0
      %558 = vmatpush1.bf16.msra.mxu0 0
      %559 = vmatprep.subr.bf16.mxu0 0
      %560 = vmatpush1.bf16.msra.mxu0 0
      %561 = vmatprep.subr.bf16.mxu0 0
      %562 = vmatpush1.bf16.msra.mxu0 0
      %563 = vmatprep.subr.bf16.mxu0 %v300
      %564 = vmatpush1.bf16.msra.mxu0 %v298
      %565 = vmatprep.subr.bf16.mxu0 %v221
      %566 = vmatpush1.bf16.msra.mxu0 %v218
      %567 = vmatprep.subr.bf16.mxu0 0
      %568 = vmatpush2.bf16.msra.mxu0 0
      %569 = vmatprep.subr.bf16.mxu0 0
      %570 = vmatpush2.bf16.msra.mxu0 0
      %571 = vmatprep.subr.bf16.mxu0 0
      %572 = vmatpush2.bf16.msra.mxu0 0
      %573 = vmatprep.subr.bf16.mxu0 0
      %574 = vmatpush2.bf16.msra.mxu0 0
      %575 = vmatprep.subr.bf16.mxu0 0
      %576 = vmatpush2.bf16.msra.mxu0 0
      %577 = vmatprep.subr.bf16.mxu0 0
      %578 = vmatpush2.bf16.msra.mxu0 0
      %579 = vmatprep.subr.bf16.mxu0 0
      %580 = vmatpush2.bf16.msra.mxu0 0
      %581 = vmatprep.subr.bf16.mxu0 0
      %582 = vmatpush2.bf16.msra.mxu0 0
      %583 = vmatprep.mubr.bf16.mxu0 0
      %584 = vmatmul.mubr.bf16.gmra.mxu0 %v269
      %v585 = vpop.f32.mrf.mxu0
      %v586 = vadd.f32 0.0, %v585
      %v587 = vpop.f32.mrf.mxu0
      %v588 = vadd.f32 0.0, %v587
      %v589 = vpop.f32.mrf.mxu0
      %v590 = vadd.f32 0.0, %v589
      %v591 = vpop.f32.mrf.mxu0
      %v592 = vadd.f32 0.0, %v591
      %593 = vmatprep.mubr.bf16.mxu0 0
      %594 = vmatmul.mubr.bf16.gmra.mxu0 %v272
      %v595 = vpop.f32.mrf.mxu0
      %v596 = vadd.f32 0.0, %v595
      %v597 = vpop.f32.mrf.mxu0
      %v598 = vadd.f32 0.0, %v597
      %v599 = vpop.f32.mrf.mxu0
      %v600 = vadd.f32 0.0, %v599
      %v601 = vpop.f32.mrf.mxu0
      %v602 = vadd.f32 0.0, %v601
      %603 = vmatprep.mubr.bf16.mxu0 0
      %604 = vmatmul.mubr.bf16.gmra.mxu0 %v275
      %v605 = vpop.f32.mrf.mxu0
      %v606 = vadd.f32 0.0, %v605
      %v607 = vpop.f32.mrf.mxu0
      %v608 = vadd.f32 0.0, %v607
      %v609 = vpop.f32.mrf.mxu0
      %v610 = vadd.f32 0.0, %v609
      %v611 = vpop.f32.mrf.mxu0
      %v612 = vadd.f32 0.0, %v611
      %613 = vmatprep.mubr.bf16.mxu0 0
      %614 = vmatmul.mubr.bf16.gmra.mxu0 %v278
      %v615 = vpop.f32.mrf.mxu0
      %v616 = vadd.f32 0.0, %v615
      %v617 = vpop.f32.mrf.mxu0
      %v618 = vadd.f32 0.0, %v617
      %v619 = vpop.f32.mrf.mxu0
      %v620 = vadd.f32 0.0, %v619
      %v621 = vpop.f32.mrf.mxu0
      %v622 = vadd.f32 0.0, %v621
      %623 = vmatprep.mubr.bf16.mxu0 0
      %624 = vmatmul.mubr.bf16.gmra.mxu0 %v281
      %v625 = vpop.f32.mrf.mxu0
      %v626 = vadd.f32 0.0, %v625
      %v627 = vpop.f32.mrf.mxu0
      %v628 = vadd.f32 0.0, %v627
      %v629 = vpop.f32.mrf.mxu0
      %v630 = vadd.f32 0.0, %v629
      %v631 = vpop.f32.mrf.mxu0
      %v632 = vadd.f32 0.0, %v631
      %633 = vdwg.mxu0
      %v634 = vmax.f32 %v337, 0.0
      %v635 = vmax.f32 %v339, 0.0
      %v636 = vmax.f32 %v420, 0.0
      %v637 = vmax.f32 %v422, 0.0
      %v638 = vmax.f32 %v503, 0.0
      %v639 = vmax.f32 %v505, 0.0
      %v640 = vmax.f32 %v586, 0.0
      %v641 = vmax.f32 %v588, 0.0
      %v642 = vmax.f32 %v341, 0.0
      %v643 = vmax.f32 %v343, 0.0
      %v644 = vmax.f32 %v424, 0.0
      %v645 = vmax.f32 %v426, 0.0
      %v646 = vmax.f32 %v507, 0.0
      %v647 = vmax.f32 %v509, 0.0
      %v648 = vmax.f32 %v590, 0.0
      %v649 = vmax.f32 %v592, 0.0
      %v650 = vpack.c.bf16 %v642, %v642
      %v651 = vpack.c.bf16 %v643, %v643
      %v652 = vpack.c.bf16 %v644, %v644
      %v653 = vpack.c.bf16 %v645, %v645
      %v654 = vpack.c.bf16 %v646, %v646
      %v655 = vpack.c.bf16 %v647, %v647
      %v656 = vpack.c.bf16 %v648, %v648
      %v657 = vpack.c.bf16 %v649, %v649
      %v658 = vmax.f32 %v347, 0.0
      %v659 = vmax.f32 %v349, 0.0
      %v660 = vmax.f32 %v430, 0.0
      %v661 = vmax.f32 %v432, 0.0
      %v662 = vmax.f32 %v513, 0.0
      %v663 = vmax.f32 %v515, 0.0
      %v664 = vmax.f32 %v596, 0.0
      %v665 = vmax.f32 %v598, 0.0
      %v666 = vmax.f32 %v351, 0.0
      %v667 = vmax.f32 %v353, 0.0
      %v668 = vmax.f32 %v434, 0.0
      %v669 = vmax.f32 %v436, 0.0
      %v670 = vmax.f32 %v517, 0.0
      %v671 = vmax.f32 %v519, 0.0
      %v672 = vmax.f32 %v600, 0.0
      %v673 = vmax.f32 %v602, 0.0
      %v674 = vpack.c.bf16 %v666, %v666
      %v675 = vpack.c.bf16 %v667, %v667
      %v676 = vpack.c.bf16 %v668, %v668
      %v677 = vpack.c.bf16 %v669, %v669
      %v678 = vpack.c.bf16 %v670, %v670
      %v679 = vpack.c.bf16 %v671, %v671
      %v680 = vpack.c.bf16 %v672, %v672
      %v681 = vpack.c.bf16 %v673, %v673
      %v682 = vmax.f32 %v357, 0.0
      %v683 = vmax.f32 %v359, 0.0
      %v684 = vmax.f32 %v440, 0.0
      %v685 = vmax.f32 %v442, 0.0
      %v686 = vmax.f32 %v523, 0.0
      %v687 = vmax.f32 %v525, 0.0
      %v688 = vmax.f32 %v606, 0.0
      %v689 = vmax.f32 %v608, 0.0
      %v690 = vpack.c.bf16 %v682, %v682
      %v691 = vpack.c.bf16 %v683, %v683
      %v692 = vpack.c.bf16 %v684, %v684
      %v693 = vpack.c.bf16 %v685, %v685
      %v694 = vpack.c.bf16 %v686, %v686
      %v695 = vpack.c.bf16 %v687, %v687
      %v696 = vpack.c.bf16 %v688, %v688
      %v697 = vpack.c.bf16 %v689, %v689
      %v698 = vmax.f32 %v361, 0.0
      %v699 = vmax.f32 %v363, 0.0
      %v700 = vmax.f32 %v444, 0.0
      %v701 = vmax.f32 %v446, 0.0
      %v702 = vmax.f32 %v527, 0.0
      %v703 = vmax.f32 %v529, 0.0
      %v704 = vmax.f32 %v610, 0.0
      %v705 = vmax.f32 %v612, 0.0
      %v714 = vrot.slane %v650, 4
      %v715 = vrot.slane %v651, 4
      %v716 = vrot.slane %v652, 4
      %v717 = vrot.slane %v653, 4
      %v718 = vrot.slane %v654, 4
      %v719 = vrot.slane %v655, 4
      %v720 = vrot.slane %v656, 4
      %v721 = vrot.slane %v657, 4
      %v730 = vrot.slane 0, 4
      %v731 = vrot.slane %v674, 4
      %v732 = vrot.slane %v675, 4
      %v733 = vrot.slane %v676, 4
      %v734 = vrot.slane %v677, 4
      %v735 = vrot.slane %v678, 4
      %v736 = vrot.slane %v679, 4
      %v737 = vrot.slane %v680, 4
      %v739 = vrot.slane %v681, 4
      %v748 = vrot.slane %v690, 4
      %v749 = vrot.slane %v691, 4
      %v750 = vrot.slane %v692, 4
      %v751 = vrot.slane %v693, 4
      %v752 = vrot.slane %v694, 4
      %v753 = vrot.slane %v695, 4
      %v754 = vrot.slane %v696, 4
      %v755 = vrot.slane %v697, 4
      %v757 = vsel %vm197, 0, %v714
      %v761 = vsel %vm197, %v650, %v715
      %v765 = vsel %vm197, %v651, %v716
      %v769 = vsel %vm197, %v652, %v717
      %v773 = vsel %vm197, %v653, %v718
      %v777 = vsel %vm197, %v654, %v719
      %v781 = vsel %vm197, %v655, %v720
      %v785 = vsel %vm197, %v656, %v721
      %v788 = vsel %vm197, %v651, %v730
      %v791 = vsel %vm197, %v652, %v731
      %v794 = vsel %vm197, %v653, %v732
      %v797 = vsel %vm197, %v654, %v733
      %v800 = vsel %vm197, %v655, %v734
      %v803 = vsel %vm197, %v656, %v735
      %v807 = vsel %vm197, %v657, %v736
      %v810 = vsel %vm197, 0, %v737
      %v813 = vsel %vm197, %v674, %v732
      %v816 = vsel %vm197, %v675, %v733
      %v819 = vsel %vm197, %v676, %v734
      %v822 = vsel %vm197, %v677, %v735
      %v825 = vsel %vm197, %v678, %v736
      %v828 = vsel %vm197, %v679, %v737
      %v832 = vsel %vm197, %v680, %v739
      %v835 = vsel %vm197, %v681, %v730
      %v838 = vsel %vm197, 0, %v748
      %v842 = vsel %vm197, %v690, %v749
      %v846 = vsel %vm197, %v691, %v750
      %v850 = vsel %vm197, %v692, %v751
      %v854 = vsel %vm197, %v693, %v752
      %v858 = vsel %vm197, %v694, %v753
      %v862 = vsel %vm197, %v695, %v754
      %v866 = vsel %vm197, %v696, %v755
      %v868 = vsel %vm197, %v691, 1065369472
      %v869 = vsel %vm197, %v692, 1065369472
      %v870 = vsel %vm197, %v693, 1065369472
      %v871 = vsel %vm197, %v694, 1065369472
      %v872 = vsel %vm197, %v695, 1065369472
      %v873 = vsel %vm197, %v696, 1065369472
      %v875 = vsel %vm197, %v697, 1065369472
      %v876 = vld [vmem:[%s2] sm:$0xf]
      %v877 = vld [vmem:[%s2 + $0x4] sm:$0xf]
      %v878 = vld [vmem:[%s2 + $0x8] sm:$0xf]
      %v882 = vunpack.c.l.b16 %v876
      %v883 = vunpack.c.l.b16 %v877
      %v884 = vunpack.c.l.b16 %v878
      %v885 = vpack.c.b16 %v883, %v882
      %v886 = vpack.c.b16 %v884, %v884
      %vm887 = vcmask 596992
      %v889 = vsel %vm887, %v885, 0
      %v892 = vsel %vm887, %v886, 0
      %v894 = vand.u32 %v868, %v285
      %v896 = vand.u32 %v869, %v285
      %v898 = vand.u32 %v870, %v285
      %v900 = vand.u32 %v871, %v285
      %v902 = vand.u32 %v872, %v285
      %v904 = vand.u32 %v873, %v285
      %v906 = vand.u32 %v875, %v285
      %908 = vmatprep.subr.bf16.mxu0 0
      %909 = vmatpush1.bf16.msra.mxu0 0
      %910 = vmatprep.subr.bf16.mxu0 0
      %911 = vmatpush1.bf16.msra.mxu0 0
      %912 = vmatprep.subr.bf16.mxu0 0
      %913 = vmatpush1.bf16.msra.mxu0 0
      %914 = vmatprep.subr.bf16.mxu0 %v896
      %915 = vmatpush1.bf16.msra.mxu0 %v894
      %916 = vmatprep.subr.bf16.mxu0 %v842
      %917 = vmatpush1.bf16.msra.mxu0 %v838
      %918 = vmatprep.subr.bf16.mxu0 %v816
      %919 = vmatpush1.bf16.msra.mxu0 %v813
      %920 = vmatprep.subr.bf16.mxu0 %v791
      %921 = vmatpush1.bf16.msra.mxu0 %v788
      %922 = vmatprep.subr.bf16.mxu0 %v761
      %923 = vmatpush1.bf16.msra.mxu0 %v757
      %924 = vmatprep.subr.bf16.mxu0 0
      %925 = vmatpush2.bf16.msra.mxu0 0
      %926 = vmatprep.subr.bf16.mxu0 0
      %927 = vmatpush2.bf16.msra.mxu0 0
      %928 = vmatprep.subr.bf16.mxu0 0
      %929 = vmatpush2.bf16.msra.mxu0 0
      %930 = vmatprep.subr.bf16.mxu0 0
      %931 = vmatpush2.bf16.msra.mxu0 0
      %932 = vmatprep.subr.bf16.mxu0 0
      %933 = vmatpush2.bf16.msra.mxu0 0
      %934 = vmatprep.subr.bf16.mxu0 0
      %935 = vmatpush2.bf16.msra.mxu0 0
      %936 = vmatprep.subr.bf16.mxu0 0
      %937 = vmatpush2.bf16.msra.mxu0 0
      %938 = vmatprep.subr.bf16.mxu0 0
      %939 = vmatpush2.bf16.msra.mxu0 0
      %940 = vmatprep.mubr.bf16.mxu0 0
      %941 = vmatmul.mubr.bf16.gmra.mxu0 %v889
      %v942 = vpop.f32.mrf.mxu0
      %v943 = vadd.f32 0.0, %v942
      %v944 = vpop.f32.mrf.mxu0
      %v945 = vadd.f32 0.0, %v944
      %v946 = vpop.f32.mrf.mxu0
      %v947 = vadd.f32 0.0, %v946
      %v948 = vpop.f32.mrf.mxu0
      %v949 = vadd.f32 0.0, %v948
      %950 = vmatprep.mubr.bf16.mxu0 0
      %951 = vmatmul.mubr.bf16.gmra.mxu0 %v892
      %v952 = vpop.f32.mrf.mxu0
      %v953 = vadd.f32 0.0, %v952
      %v954 = vpop.f32.mrf.mxu0
      %v955 = vadd.f32 0.0, %v954
      %v956 = vpop.f32.mrf.mxu0
      %v957 = vpop.f32.mrf.mxu0
      %958 = vdwg.mxu0
      %959 = vmatprep.subr.bf16.mxu0 0
      %960 = vmatpush1.bf16.msra.mxu0 0
      %961 = vmatprep.subr.bf16.mxu0 0
      %962 = vmatpush1.bf16.msra.mxu0 0
      %963 = vmatprep.subr.bf16.mxu0 0
      %964 = vmatpush1.bf16.msra.mxu0 0
      %965 = vmatprep.subr.bf16.mxu0 %v900
      %966 = vmatpush1.bf16.msra.mxu0 %v898
      %967 = vmatprep.subr.bf16.mxu0 %v850
      %968 = vmatpush1.bf16.msra.mxu0 %v846
      %969 = vmatprep.subr.bf16.mxu0 %v822
      %970 = vmatpush1.bf16.msra.mxu0 %v819
      %971 = vmatprep.subr.bf16.mxu0 %v797
      %972 = vmatpush1.bf16.msra.mxu0 %v794
      %973 = vmatprep.subr.bf16.mxu0 %v769
      %974 = vmatpush1.bf16.msra.mxu0 %v765
      %975 = vmatprep.subr.bf16.mxu0 0
      %976 = vmatpush2.bf16.msra.mxu0 0
      %977 = vmatprep.subr.bf16.mxu0 0
      %978 = vmatpush2.bf16.msra.mxu0 0
      %979 = vmatprep.subr.bf16.mxu0 0
      %980 = vmatpush2.bf16.msra.mxu0 0
      %981 = vmatprep.subr.bf16.mxu0 0
      %982 = vmatpush2.bf16.msra.mxu0 0
      %983 = vmatprep.subr.bf16.mxu0 0
      %984 = vmatpush2.bf16.msra.mxu0 0
      %985 = vmatprep.subr.bf16.mxu0 0
      %986 = vmatpush2.bf16.msra.mxu0 0
      %987 = vmatprep.subr.bf16.mxu0 0
      %988 = vmatpush2.bf16.msra.mxu0 0
      %989 = vmatprep.subr.bf16.mxu0 0
      %990 = vmatpush2.bf16.msra.mxu0 0
      %991 = vmatprep.mubr.bf16.mxu0 0
      %992 = vmatmul.mubr.bf16.gmra.mxu0 %v889
      %v993 = vpop.f32.mrf.mxu0
      %v994 = vadd.f32 0.0, %v993
      %v995 = vpop.f32.mrf.mxu0
      %v996 = vadd.f32 0.0, %v995
      %v997 = vpop.f32.mrf.mxu0
      %v998 = vadd.f32 0.0, %v997
      %v999 = vpop.f32.mrf.mxu0
      %v1000 = vadd.f32 0.0, %v999
      %1001 = vmatprep.mubr.bf16.mxu0 0
      %1002 = vmatmul.mubr.bf16.gmra.mxu0 %v892
      %v1003 = vpop.f32.mrf.mxu0
      %v1004 = vadd.f32 0.0, %v1003
      %v1005 = vpop.f32.mrf.mxu0
      %v1006 = vadd.f32 0.0, %v1005
      %v1007 = vpop.f32.mrf.mxu0
      %v1008 = vpop.f32.mrf.mxu0
      %1009 = vdwg.mxu0
      %1010 = vmatprep.subr.bf16.mxu0 0
      %1011 = vmatpush1.bf16.msra.mxu0 0
      %1012 = vmatprep.subr.bf16.mxu0 0
      %1013 = vmatpush1.bf16.msra.mxu0 0
      %1014 = vmatprep.subr.bf16.mxu0 0
      %1015 = vmatpush1.bf16.msra.mxu0 0
      %1016 = vmatprep.subr.bf16.mxu0 %v904
      %1017 = vmatpush1.bf16.msra.mxu0 %v902
      %1018 = vmatprep.subr.bf16.mxu0 %v858
      %1019 = vmatpush1.bf16.msra.mxu0 %v854
      %1020 = vmatprep.subr.bf16.mxu0 %v828
      %1021 = vmatpush1.bf16.msra.mxu0 %v825
      %1022 = vmatprep.subr.bf16.mxu0 %v803
      %1023 = vmatpush1.bf16.msra.mxu0 %v800
      %1024 = vmatprep.subr.bf16.mxu0 %v777
      %1025 = vmatpush1.bf16.msra.mxu0 %v773
      %1026 = vmatprep.subr.bf16.mxu0 0
      %1027 = vmatpush2.bf16.msra.mxu0 0
      %1028 = vmatprep.subr.bf16.mxu0 0
      %1029 = vmatpush2.bf16.msra.mxu0 0
      %1030 = vmatprep.subr.bf16.mxu0 0
      %1031 = vmatpush2.bf16.msra.mxu0 0
      %1032 = vmatprep.subr.bf16.mxu0 0
      %1033 = vmatpush2.bf16.msra.mxu0 0
      %1034 = vmatprep.subr.bf16.mxu0 0
      %1035 = vmatpush2.bf16.msra.mxu0 0
      %1036 = vmatprep.subr.bf16.mxu0 0
      %1037 = vmatpush2.bf16.msra.mxu0 0
      %1038 = vmatprep.subr.bf16.mxu0 0
      %1039 = vmatpush2.bf16.msra.mxu0 0
      %1040 = vmatprep.subr.bf16.mxu0 0
      %1041 = vmatpush2.bf16.msra.mxu0 0
      %1042 = vmatprep.mubr.bf16.mxu0 0
      %1043 = vmatmul.mubr.bf16.gmra.mxu0 %v889
      %v1044 = vpop.f32.mrf.mxu0
      %v1045 = vadd.f32 0.0, %v1044
      %v1046 = vpop.f32.mrf.mxu0
      %v1047 = vadd.f32 0.0, %v1046
      %v1048 = vpop.f32.mrf.mxu0
      %v1049 = vadd.f32 0.0, %v1048
      %v1050 = vpop.f32.mrf.mxu0
      %v1051 = vadd.f32 0.0, %v1050
      %1052 = vmatprep.mubr.bf16.mxu0 0
      %1053 = vmatmul.mubr.bf16.gmra.mxu0 %v892
      %v1054 = vpop.f32.mrf.mxu0
      %v1055 = vadd.f32 0.0, %v1054
      %v1056 = vpop.f32.mrf.mxu0
      %v1057 = vadd.f32 0.0, %v1056
      %v1058 = vpop.f32.mrf.mxu0
      %v1059 = vpop.f32.mrf.mxu0
      %1060 = vdwg.mxu0
      %1061 = vmatprep.subr.bf16.mxu0 0
      %1062 = vmatpush1.bf16.msra.mxu0 0
      %1063 = vmatprep.subr.bf16.mxu0 0
      %1064 = vmatpush1.bf16.msra.mxu0 0
      %1065 = vmatprep.subr.bf16.mxu0 0
      %1066 = vmatpush1.bf16.msra.mxu0 0
      %1067 = vmatprep.subr.bf16.mxu0 %v300
      %1068 = vmatpush1.bf16.msra.mxu0 %v906
      %1069 = vmatprep.subr.bf16.mxu0 %v866
      %1070 = vmatpush1.bf16.msra.mxu0 %v862
      %1071 = vmatprep.subr.bf16.mxu0 %v835
      %1072 = vmatpush1.bf16.msra.mxu0 %v832
      %1073 = vmatprep.subr.bf16.mxu0 %v810
      %1074 = vmatpush1.bf16.msra.mxu0 %v807
      %1075 = vmatprep.subr.bf16.mxu0 %v785
      %1076 = vmatpush1.bf16.msra.mxu0 %v781
      %1077 = vmatprep.subr.bf16.mxu0 0
      %1078 = vmatpush2.bf16.msra.mxu0 0
      %1079 = vmatprep.subr.bf16.mxu0 0
      %1080 = vmatpush2.bf16.msra.mxu0 0
      %1081 = vmatprep.subr.bf16.mxu0 0
      %1082 = vmatpush2.bf16.msra.mxu0 0
      %1083 = vmatprep.subr.bf16.mxu0 0
      %1084 = vmatpush2.bf16.msra.mxu0 0
      %1085 = vmatprep.subr.bf16.mxu0 0
      %1086 = vmatpush2.bf16.msra.mxu0 0
      %1087 = vmatprep.subr.bf16.mxu0 0
      %1088 = vmatpush2.bf16.msra.mxu0 0
      %1089 = vmatprep.subr.bf16.mxu0 0
      %1090 = vmatpush2.bf16.msra.mxu0 0
      %1091 = vmatprep.subr.bf16.mxu0 0
      %1092 = vmatpush2.bf16.msra.mxu0 0
      %1093 = vmatprep.mubr.bf16.mxu0 0
      %1094 = vmatmul.mubr.bf16.gmra.mxu0 %v889
      %v1095 = vpop.f32.mrf.mxu0
      %v1096 = vadd.f32 0.0, %v1095
      %v1097 = vpop.f32.mrf.mxu0
      %v1098 = vadd.f32 0.0, %v1097
      %v1099 = vpop.f32.mrf.mxu0
      %v1100 = vadd.f32 0.0, %v1099
      %v1101 = vpop.f32.mrf.mxu0
      %v1102 = vadd.f32 0.0, %v1101
      %1103 = vmatprep.mubr.bf16.mxu0 0
      %1104 = vmatmul.mubr.bf16.gmra.mxu0 %v892
      %v1105 = vpop.f32.mrf.mxu0
      %v1106 = vadd.f32 0.0, %v1105
      %v1107 = vpop.f32.mrf.mxu0
      %v1108 = vadd.f32 0.0, %v1107
      %v1109 = vpop.f32.mrf.mxu0
      %v1110 = vpop.f32.mrf.mxu0
      %1111 = vdwg.mxu0
      %v1112 = vmax.f32 %v943, 0.0
      %v1113 = vmax.f32 %v945, 0.0
      %v1114 = vmax.f32 %v994, 0.0
      %v1115 = vmax.f32 %v996, 0.0
      %v1116 = vmax.f32 %v1045, 0.0
      %v1117 = vmax.f32 %v1047, 0.0
      %v1118 = vmax.f32 %v1096, 0.0
      %v1119 = vmax.f32 %v1098, 0.0
      %v1120 = vmax.f32 %v947, 0.0
      %v1121 = vmax.f32 %v949, 0.0
      %v1122 = vmax.f32 %v998, 0.0
      %v1123 = vmax.f32 %v1000, 0.0
      %v1124 = vmax.f32 %v1049, 0.0
      %v1125 = vmax.f32 %v1051, 0.0
      %v1126 = vmax.f32 %v1100, 0.0
      %v1127 = vmax.f32 %v1102, 0.0
      %v1128 = vmax.f32 %v953, 0.0
      %v1129 = vmax.f32 %v955, 0.0
      %v1130 = vmax.f32 %v1004, 0.0
      %v1131 = vmax.f32 %v1006, 0.0
      %v1132 = vmax.f32 %v1055, 0.0
      %v1133 = vmax.f32 %v1057, 0.0
      %v1134 = vmax.f32 %v1106, 0.0
      %v1135 = vmax.f32 %v1108, 0.0
      %v1136 = vadd.f32 %v1112, %v658
      %v1137 = vadd.f32 %v1113, %v659
      %v1138 = vadd.f32 %v1114, %v660
      %v1139 = vadd.f32 %v1115, %v661
      %v1140 = vadd.f32 %v1116, %v662
      %v1141 = vadd.f32 %v1117, %v663
      %v1142 = vadd.f32 %v1118, %v664
      %v1143 = vadd.f32 %v1119, %v665
      %v1144 = vmax.f32 %v1136, %v1137
      %v1145 = vmax.f32 %v1137, %v1138
      %v1146 = vmax.f32 %v1138, %v1139
      %v1147 = vmax.f32 %v1139, %v1140
      %v1148 = vmax.f32 %v1140, %v1141
      %v1149 = vmax.f32 %v1141, %v1142
      %v1150 = vmax.f32 %v1142, %v1143
      %v1151 = vmax.f32 %v1136, %v1144
      %v1152 = vmax.f32 %v1144, %v1145
      %v1153 = vmax.f32 %v1145, %v1146
      %v1154 = vmax.f32 %v1146, %v1147
      %v1155 = vmax.f32 %v1147, %v1148
      %v1156 = vmax.f32 %v1148, %v1149
      %v1157 = vmax.f32 %v1149, %v1150
      %v1158 = vmax.f32 %v1150, %v1143
      %v1159 = vadd.f32 %v1120, %v1128
      %v1160 = vadd.f32 %v1121, %v1129
      %v1161 = vadd.f32 %v1122, %v1130
      %v1162 = vadd.f32 %v1123, %v1131
      %v1163 = vadd.f32 %v1124, %v1132
      %v1164 = vadd.f32 %v1125, %v1133
      %v1165 = vadd.f32 %v1126, %v1134
      %v1166 = vadd.f32 %v1127, %v1135
      %v1167 = vmax.f32 %v1159, %v1160
      %v1168 = vmax.f32 %v1160, %v1161
      %v1169 = vmax.f32 %v1161, %v1162
      %v1170 = vmax.f32 %v1162, %v1163
      %v1171 = vmax.f32 %v1163, %v1164
      %v1172 = vmax.f32 %v1164, %v1165
      %v1173 = vmax.f32 %v1165, %v1166
      %v1174 = vmax.f32 %v1159, %v1167
      %v1175 = vmax.f32 %v1167, %v1168
      %v1176 = vmax.f32 %v1168, %v1169
      %v1177 = vmax.f32 %v1169, %v1170
      %v1178 = vmax.f32 %v1170, %v1171
      %v1179 = vmax.f32 %v1171, %v1172
      %v1180 = vmax.f32 %v1172, %v1173
      %v1181 = vmax.f32 %v1173, %v1166
      %v1182 = vadd.f32 %v634, %v367
      %v1183 = vadd.f32 %v635, %v369
      %v1184 = vadd.f32 %v636, %v450
      %v1185 = vadd.f32 %v637, %v452
      %v1186 = vadd.f32 %v638, %v533
      %v1187 = vadd.f32 %v639, %v535
      %v1188 = vadd.f32 %v640, %v616
      %v1189 = vadd.f32 %v641, %v618
      %1190 = vst [vmem:[%s170] sm:$0xff] %v1182
      %1191 = vst [vmem:[%s170 + $0x8] sm:$0xff] %v1183
      %1192 = vst [vmem:[%s170 + $0x10] sm:$0xff] %v1184
      %1193 = vst [vmem:[%s170 + $0x18] sm:$0xff] %v1185
      %1194 = vst [vmem:[%s170 + $0x20] sm:$0xff] %v1186
      %1195 = vst [vmem:[%s170 + $0x28] sm:$0xff] %v1187
      %1196 = vst [vmem:[%s170 + $0x30] sm:$0xff] %v1188
      %1197 = vst [vmem:[%s170 + $0x38] sm:$0xff] %v1189
      %v1198 = vadd.f32 %v1151, %v371
      %v1199 = vadd.f32 %v1152, %v373
      %v1200 = vadd.f32 %v1153, %v454
      %v1201 = vadd.f32 %v1154, %v456
      %v1202 = vadd.f32 %v1155, %v537
      %v1203 = vadd.f32 %v1156, %v539
      %v1204 = vadd.f32 %v1157, %v620
      %v1205 = vadd.f32 %v1158, %v622
      %1206 = vst [vmem:[%s170 + $0x40] sm:$0xff] %v1198
      %1207 = vst [vmem:[%s170 + $0x48] sm:$0xff] %v1199
      %1208 = vst [vmem:[%s170 + $0x50] sm:$0xff] %v1200
      %1209 = vst [vmem:[%s170 + $0x58] sm:$0xff] %v1201
      %1210 = vst [vmem:[%s170 + $0x60] sm:$0xff] %v1202
      %1211 = vst [vmem:[%s170 + $0x68] sm:$0xff] %v1203
      %1212 = vst [vmem:[%s170 + $0x70] sm:$0xff] %v1204
      %1213 = vst [vmem:[%s170 + $0x78] sm:$0xff] %v1205
      %v1214 = vadd.f32 %v1174, %v377
      %v1215 = vadd.f32 %v1175, %v379
      %v1216 = vadd.f32 %v1176, %v460
      %v1217 = vadd.f32 %v1177, %v462
      %v1218 = vadd.f32 %v1178, %v543
      %v1219 = vadd.f32 %v1179, %v545
      %v1220 = vadd.f32 %v1180, %v626
      %v1221 = vadd.f32 %v1181, %v628
      %1222 = vst [vmem:[%s170 + $0x80] sm:$0xff] %v1214
      %1223 = vst [vmem:[%s170 + $0x88] sm:$0xff] %v1215
      %1224 = vst [vmem:[%s170 + $0x90] sm:$0xff] %v1216
      %1225 = vst [vmem:[%s170 + $0x98] sm:$0xff] %v1217
      %1226 = vst [vmem:[%s170 + $0xa0] sm:$0xff] %v1218
      %1227 = vst [vmem:[%s170 + $0xa8] sm:$0xff] %v1219
      %1228 = vst [vmem:[%s170 + $0xb0] sm:$0xff] %v1220
      %1229 = vst [vmem:[%s170 + $0xb8] sm:$0xff] %v1221
      %v1230 = vadd.f32 %v698, %v381
      %v1231 = vadd.f32 %v699, %v383
      %v1232 = vadd.f32 %v700, %v464
      %v1233 = vadd.f32 %v701, %v466
      %v1234 = vadd.f32 %v702, %v547
      %v1235 = vadd.f32 %v703, %v549
      %v1236 = vadd.f32 %v704, %v630
      %v1237 = vadd.f32 %v705, %v632
      %1238 = vst [vmem:[%s170 + $0xc0] sm:$0xff] %v1230
      %1239 = vst [vmem:[%s170 + $0xc8] sm:$0xff] %v1231
      %1240 = vst [vmem:[%s170 + $0xd0] sm:$0xff] %v1232
      %1241 = vst [vmem:[%s170 + $0xd8] sm:$0xff] %v1233
      %1242 = vst [vmem:[%s170 + $0xe0] sm:$0xff] %v1234
      %1243 = vst [vmem:[%s170 + $0xe8] sm:$0xff] %v1235
      %1244 = vst [vmem:[%s170 + $0xf0] sm:$0xff] %v1236
      %1245 = vst [vmem:[%s170 + $0xf8] sm:$0xff] %v1237
      %p1246 = scmp.lt.s32.totalorder %s14, 3
      %s1247 = scalar_select %p1246, %s14, 3
      %s1248 = smul.addr %s1247, 32
      %s1249 = smul.addr %s1248, 8
      %s1250 = scalar_lea.vmem %s3, %s1249
      // Predicated region
      $region33: #{_lambda_.1} parent=31 // pred_check
        %p1251 = pneg %p100
      $region34: #{_lambda_.1} parent=31 // pred_check_branch
        %1253 = sbr.rel (%p1251) target = $region36
      $region35: #{_lambda_.1} parent=31 // pred_region
        _
      $region36: #{_lambda_.1} parent=31 // pred_fallthru
        _
    $region32: #{_lambda_.1} parent=5 // pred_fallthru
      _
    %p1254 = scmp.le.s32.totalorder 2, %s9
    // Predicated region
    $region37: #{_lambda_.1} parent=5 // pred_check
      %p1255 = pneg %p1254
    $region38: #{_lambda_.1} parent=5 // pred_check_branch
      %1257 = sbr.rel (%p1255) target = $region40
    $region39: #{_lambda_.1} parent=5 // pred_region
      %s1258 = ssub.s32 %s9, 2
      // Predicated region
      $region41: #{_lambda_.1} parent=39 // pred_check
        %p1259 = pneg %p106
      $region42: #{_lambda_.1} parent=39 // pred_check_branch
        %1261 = sbr.rel (%p1259) target = $region44
      $region43: #{_lambda_.1} parent=39 // pred_region
        %p1262 = scmp.lt.s32.totalorder %s15, 3
        %s1263 = scalar_select %p1262, %s15, 3
        %s1264 = smul.addr %s1263, 32
        %s1265 = smul.addr %s1264, 8
        %s1266 = scalar_lea.vmem %s3, %s1265
      $region44: #{_lambda_.1} parent=39 // pred_fallthru
        _
    $region40: #{_lambda_.1} parent=5 // pred_fallthru
      _
  $region6: #{_lambda_.1} parent=0 // loop_footer
    %s13 = sadd.s32 1, %s9
  $region7: #{_lambda_.1} parent=0 // loop_footer_branch
    %8 = sbr.rel target = $region3
  $region8: #{_lambda_.1} parent=0 // loop_exit
    _

</llo_original>
